<compile_context>
chip_gen: v6e
topology: v6e:2x2x1
jax: 0.10.0
libtpu: 0.0.40
codegen_flags: <defaults>
</compile_context>

<pallas_src>
import jax
import jax.numpy as jnp
from jax.experimental import pallas as pl
from jax.experimental.pallas import tpu as pltpu


# ----------------------------- config ---------------------------------------
class Cfg:
    rnn_module_shrink_ratio = 0.5      # hidden_out = hidden_size * ratio
    rnn_module_dropout = 0.0           # dropout is identity at inference
    rnn_module_activation = "relu"     # applied after layernorm


# ----------------------------- kernel ---------------------------------------
def lstm_ln_relu_kernel(x_ref, w_ih_ref, w_hh_ref, b_ref, gamma_ref, beta_ref,
                        out_ref):
    """One invocation = full LSTM + LayerNorm + ReLU.

    x_ref     : (T*B, H_in) f32, t-major rows (row t*B + b  ==  x[b, t, :])
    w_ih_ref  : (H_in, 4H)  f32, pre-transposed, gate columns [i, f, o, g]
    w_hh_ref  : (H,   4H)   f32, pre-transposed, gate columns [i, f, o, g]
    b_ref     : (1, 4H)     f32, b_ih + b_hh, gate columns [i, f, o, g]
    gamma_ref : (1, H)      f32 LayerNorm weight
    beta_ref  : (1, H)      f32 LayerNorm bias
    out_ref   : (B, T*H)    f32 lane-dense slab; out[b, t*H + h] == y[b, t, h]
    """
    TB, _ = x_ref.shape
    H = w_hh_ref.shape[0]
    B = out_ref.shape[0]
    T = TB // B

    # Loop-invariant loads, hoisted once (JAX does not CSE these inside loops).
    w_hh = w_hh_ref[...]                  # (H, 4H)
    gamma = gamma_ref[...]                # (1, H)
    beta = beta_ref[...]                  # (1, H)

    # ---- Phase 1: input projection for ALL timesteps in one MXU matmul ------
    # Rows are t-major, so each step's slice below is a contiguous sublane pair.
    pre = jnp.dot(x_ref[...], w_ih_ref[...],
                  preferred_element_type=jnp.float32) + b_ref[...]   # (T*B, 4H)

    # ---- Phase 2: serial recurrence; only h @ W_hh + 3 EUP ops per step -----
    h = jnp.zeros((B, H), jnp.float32)
    c = jnp.zeros((B, H), jnp.float32)
    hs = []
    for t in range(T):    # static & small -> fully unrolled, full LLO visibility
        gates = pre[t * B:(t + 1) * B, :] + jnp.dot(
            h, w_hh, preferred_element_type=jnp.float32)             # (B, 4H)
        # Gate columns were reordered to [i, f, o, g] at init time:
        sio = jax.nn.sigmoid(gates[:, :3 * H])   # one EUP pass: [i | f | o]
        g_g = jnp.tanh(gates[:, 3 * H:])         # one EUP pass: g
        c = sio[:, H:2 * H] * c + sio[:, :H] * g_g
        h = sio[:, 2 * H:3 * H] * jnp.tanh(c)
        hs.append(h)

    # ---- Phase 3 (epilogue, off the critical path): batched LN + ReLU -------
    # Variance via E[x^2] - mean^2 so the two reductions pipeline in the XLU.
    h_all = jnp.concatenate(hs, axis=0)                    # (T*B, H), t-major
    mean = jnp.mean(h_all, axis=-1, keepdims=True)
    mean_sq = jnp.mean(h_all * h_all, axis=-1, keepdims=True)
    var = mean_sq - mean * mean
    y = (h_all - mean) * jax.lax.rsqrt(var + 1e-5) * gamma + beta
    y = jnp.maximum(y, 0.0)                                # Dropout==identity; ReLU

    # ---- Phase 4: static-offset stores into the lane-dense (B, T*H) slab ----
    for t in range(T):
        out_ref[:, t * H:(t + 1) * H] = y[t * B:(t + 1) * B, :]


# ----------------------------- wrapper ---------------------------------------
def lstm_module_forward(x, params):
    """x: (B, T, H_in) float32 (batch-first). Returns (B, T, H_out) float32."""
    B, T, H_in = x.shape
    w_ih_t = params["w_ih_t"]            # (H_in, 4H)
    w_hh_t = params["w_hh_t"]            # (H,   4H)
    b = params["b"]                      # (1, 4H)
    gamma = params["gamma"]              # (1, H)
    beta = params["beta"]                # (1, H)
    H = w_hh_t.shape[0]
    G = 4 * H

    # t-major rows: x_tm[t*B + b, :] == x[b, t, :]  (one-time ~2 KiB transpose).
    x_tm = jnp.transpose(x, (1, 0, 2)).reshape(T * B, H_in)

    out_flat = pl.pallas_call(
        lstm_ln_relu_kernel,
        out_shape=jax.ShapeDtypeStruct((B, T * H), jnp.float32),
        grid_spec=pltpu.PrefetchScalarGridSpec(
            num_scalar_prefetch=0,
            grid=(1,),                                      # single invocation
            in_specs=[
                pl.BlockSpec((T * B, H_in), lambda i: (0, 0)),
                pl.BlockSpec((H_in, G), lambda i: (0, 0)),
                pl.BlockSpec((H, G), lambda i: (0, 0)),
                pl.BlockSpec((1, G), lambda i: (0, 0)),
                pl.BlockSpec((1, H), lambda i: (0, 0)),
                pl.BlockSpec((1, H), lambda i: (0, 0)),
            ],
            out_specs=pl.BlockSpec((B, T * H), lambda i: (0, 0)),
        ),
        compiler_params=pltpu.CompilerParams(
            dimension_semantics=("arbitrary",),
        ),
    )(x_tm, w_ih_t, w_hh_t, b, gamma, beta)

    # Free row-major reshape: out_flat[b, t*H + h] == y[b, t, h]. No transpose.
    return out_flat.reshape(B, T, H)


# ----------------------------- params ----------------------------------------
def init_raw_params(key, hidden_size, hidden_out):
    """nn.LSTM / nn.LayerNorm parameters in PyTorch layout (f32, gates i,f,g,o)."""
    k1, k2, k3, k4 = jax.random.split(key, 4)
    bound = 1.0 / jnp.sqrt(jnp.float32(hidden_out))
    return {
        "w_ih": jax.random.uniform(k1, (4 * hidden_out, hidden_size), jnp.float32,
                                   -bound, bound),
        "w_hh": jax.random.uniform(k2, (4 * hidden_out, hidden_out), jnp.float32,
                                   -bound, bound),
        "b_ih": jax.random.uniform(k3, (4 * hidden_out,), jnp.float32, -bound, bound),
        "b_hh": jax.random.uniform(k4, (4 * hidden_out,), jnp.float32, -bound, bound),
        "gamma": jnp.ones((hidden_out,), jnp.float32),
        "beta": jnp.zeros((hidden_out,), jnp.float32),
    }


def _reorder_ifgo_to_ifog(w, H):
    """Last-dim gate blocks [i,f,g,o] -> [i,f,o,g] (one sigmoid / one tanh region)."""
    return jnp.concatenate([w[..., :2 * H], w[..., 3 * H:], w[..., 2 * H:3 * H]],
                           axis=-1)


def prepare_kernel_params(raw, hidden_out):
    """Transpose, reorder gate columns and fold biases for the kernel."""
    H = hidden_out
    return {
        "w_ih_t": _reorder_ifgo_to_ifog(raw["w_ih"].T, H),          # (H_in, 4H)
        "w_hh_t": _reorder_ifgo_to_ifog(raw["w_hh"].T, H),          # (H,   4H)
        "b": _reorder_ifgo_to_ifog((raw["b_ih"] + raw["b_hh"]).reshape(1, 4 * H), H),
        "gamma": raw["gamma"].reshape(1, H),
        "beta": raw["beta"].reshape(1, H),
    }


# ----------------------------- pure-JAX reference -----------------------------
def reference_forward(x, raw):
    """f32 reference with PyTorch nn.LSTM / LayerNorm / ReLU semantics."""
    B, T, _ = x.shape
    H = raw["w_hh"].shape[1]
    w_ih_t = raw["w_ih"].T
    w_hh_t = raw["w_hh"].T
    bias = raw["b_ih"] + raw["b_hh"]
    h = jnp.zeros((B, H), jnp.float32)
    c = jnp.zeros((B, H), jnp.float32)
    ys = []
    for t in range(T):
        gates = x[:, t, :] @ w_ih_t + h @ w_hh_t + bias
        i = jax.nn.sigmoid(gates[:, 0 * H:1 * H])
        f = jax.nn.sigmoid(gates[:, 1 * H:2 * H])
        g = jnp.tanh(gates[:, 2 * H:3 * H])
        o = jax.nn.sigmoid(gates[:, 3 * H:4 * H])
        c = f * c + i * g
        h = o * jnp.tanh(c)
        ys.append(h)
    y = jnp.stack(ys, axis=1)                              # (B, T, H)
    mean = y.mean(-1, keepdims=True)
    var = ((y - mean) ** 2).mean(-1, keepdims=True)
    y = (y - mean) / jnp.sqrt(var + 1e-5) * raw["gamma"] + raw["beta"]
    return jnp.maximum(y, 0.0)


# ----------------------------- main -------------------------------------------
if __name__ == "__main__":
    cfg = Cfg()
    batch, seq, hidden_size = 2, 8, 32
    hidden_out = int(hidden_size * cfg.rnn_module_shrink_ratio)   # 16

    key = jax.random.PRNGKey(0)
    kx, kp = jax.random.split(key)
    x = jax.random.normal(kx, (batch, seq, hidden_size), jnp.float32)
    raw = init_raw_params(kp, hidden_size, hidden_out)
    params = prepare_kernel_params(raw, hidden_out)

    out = jax.jit(lstm_module_forward)(x, params)
    jax.block_until_ready(out)
    assert out.shape == (batch, seq, hidden_out), out.shape

    # Tolerance-assert against the f32 reference (kernel and reference matmuls may
    # use different MXU pass counts, hence the loose-but-meaningful bound).
    ref = reference_forward(x, raw)
    max_err = float(jnp.max(jnp.abs(out - ref)))
    assert max_err < 3e-2, f"max abs err {max_err}"

    print("KERNEL_OK")
</pallas_src>

<mosaic_0001>
module attributes {stable_mosaic.version = 11 : i64} {
  func.func @lstm_ln_relu_kernel(%arg0: i32, %arg1: memref<16x32xf32, #tpu.memory_space<vmem>>, %arg2: memref<32x64xf32, #tpu.memory_space<vmem>>, %arg3: memref<16x64xf32, #tpu.memory_space<vmem>>, %arg4: memref<1x64xf32, #tpu.memory_space<vmem>>, %arg5: memref<1x16xf32, #tpu.memory_space<vmem>>, %arg6: memref<1x16xf32, #tpu.memory_space<vmem>>, %arg7: memref<2x128xf32, #tpu.memory_space<vmem>>) attributes {dimension_semantics = [#tpu.dimension_semantics<arbitrary>], iteration_bounds = array<i64: 1>, scalar_prefetch = 0 : i64, scratch_operands = 0 : i64, tpu.core_type = #tpu.core_type<tc>, window_params = [{pipeline_mode = #tpu.pipeline_mode<synchronous>, transform_indices = @transform_0, window_bounds = array<i64: 16, 32>}, {pipeline_mode = #tpu.pipeline_mode<synchronous>, transform_indices = @transform_1, window_bounds = array<i64: 32, 64>}, {pipeline_mode = #tpu.pipeline_mode<synchronous>, transform_indices = @transform_2, window_bounds = array<i64: 16, 64>}, {pipeline_mode = #tpu.pipeline_mode<synchronous>, transform_indices = @transform_3, window_bounds = array<i64: 1, 64>}, {pipeline_mode = #tpu.pipeline_mode<synchronous>, transform_indices = @transform_4, window_bounds = array<i64: 1, 16>}, {pipeline_mode = #tpu.pipeline_mode<synchronous>, transform_indices = @transform_5, window_bounds = array<i64: 1, 16>}, {pipeline_mode = #tpu.pipeline_mode<synchronous>, transform_indices = @transform_6, window_bounds = array<i64: 2, 128>}]} {
    %c0 = arith.constant 0 : index
    %c0_0 = arith.constant 0 : index
    %0 = vector.load %arg3[%c0, %c0_0] : memref<16x64xf32, #tpu.memory_space<vmem>>, vector<16x64xf32>
    %c0_1 = arith.constant 0 : index
    %c0_2 = arith.constant 0 : index
    %1 = vector.load %arg5[%c0_1, %c0_2] : memref<1x16xf32, #tpu.memory_space<vmem>>, vector<1x16xf32>
    %c0_3 = arith.constant 0 : index
    %c0_4 = arith.constant 0 : index
    %2 = vector.load %arg6[%c0_3, %c0_4] : memref<1x16xf32, #tpu.memory_space<vmem>>, vector<1x16xf32>
    %c0_5 = arith.constant 0 : index
    %c0_6 = arith.constant 0 : index
    %3 = vector.load %arg1[%c0_5, %c0_6] : memref<16x32xf32, #tpu.memory_space<vmem>>, vector<16x32xf32>
    %c0_7 = arith.constant 0 : index
    %c0_8 = arith.constant 0 : index
    %4 = vector.load %arg2[%c0_7, %c0_8] : memref<32x64xf32, #tpu.memory_space<vmem>>, vector<32x64xf32>
    %cst = arith.constant dense<0.000000e+00> : vector<16x64xf32>
    %5 = tpu.matmul %3, %4, %cst {dimension_numbers = #tpu.dot_dimension_numbers<[1], [0], [0], [1], [0, 0, 1, 1], [], []>} : vector<16x32xf32>, vector<32x64xf32>, vector<16x64xf32> -> vector<16x64xf32>
    %c0_9 = arith.constant 0 : index
    %c0_10 = arith.constant 0 : index
    %6 = vector.load %arg4[%c0_9, %c0_10] : memref<1x64xf32, #tpu.memory_space<vmem>>, vector<1x64xf32>
    %7 = vector.broadcast %6 : vector<1x64xf32> to vector<16x64xf32>
    %8 = arith.addf %5, %7 : vector<16x64xf32>
    %cst_11 = arith.constant 0.000000e+00 : f32
    %9 = vector.broadcast %cst_11 : f32 to vector<2x16xf32>
    %cst_12 = arith.constant 0.000000e+00 : f32
    %10 = vector.broadcast %cst_12 : f32 to vector<2x16xf32>
    %11 = vector.extract_strided_slice %8 {offsets = [0, 0], sizes = [2, 64], strides = [1, 1]} : vector<16x64xf32> to vector<2x64xf32>
    %cst_13 = arith.constant dense<0.000000e+00> : vector<2x64xf32>
    %12 = tpu.matmul %9, %0, %cst_13 {dimension_numbers = #tpu.dot_dimension_numbers<[1], [0], [0], [1], [0, 0, 1, 1], [], []>} : vector<2x16xf32>, vector<16x64xf32>, vector<2x64xf32> -> vector<2x64xf32>
    %13 = arith.addf %11, %12 : vector<2x64xf32>
    %14 = vector.extract_strided_slice %13 {offsets = [0, 0], sizes = [2, 48], strides = [1, 1]} : vector<2x64xf32> to vector<2x48xf32>
    %15 = arith.negf %14 : vector<2x48xf32>
    %16 = math.exp %15 : vector<2x48xf32>
    %cst_14 = arith.constant 1.000000e+00 : f32
    %17 = vector.broadcast %cst_14 : f32 to vector<2x48xf32>
    %18 = arith.addf %17, %16 : vector<2x48xf32>
    %19 = arith.divf %17, %18 : vector<2x48xf32>
    %20 = vector.extract_strided_slice %13 {offsets = [0, 48], sizes = [2, 16], strides = [1, 1]} : vector<2x64xf32> to vector<2x16xf32>
    %21 = math.tanh %20 : vector<2x16xf32>
    %22 = vector.extract_strided_slice %19 {offsets = [0, 16], sizes = [2, 16], strides = [1, 1]} : vector<2x48xf32> to vector<2x16xf32>
    %23 = arith.mulf %22, %10 : vector<2x16xf32>
    %24 = vector.extract_strided_slice %19 {offsets = [0, 0], sizes = [2, 16], strides = [1, 1]} : vector<2x48xf32> to vector<2x16xf32>
    %25 = arith.mulf %24, %21 : vector<2x16xf32>
    %26 = arith.addf %23, %25 : vector<2x16xf32>
    %27 = vector.extract_strided_slice %19 {offsets = [0, 32], sizes = [2, 16], strides = [1, 1]} : vector<2x48xf32> to vector<2x16xf32>
    %28 = math.tanh %26 : vector<2x16xf32>
    %29 = arith.mulf %27, %28 : vector<2x16xf32>
    %30 = vector.extract_strided_slice %8 {offsets = [2, 0], sizes = [2, 64], strides = [1, 1]} : vector<16x64xf32> to vector<2x64xf32>
    %cst_15 = arith.constant dense<0.000000e+00> : vector<2x64xf32>
    %31 = tpu.matmul %29, %0, %cst_15 {dimension_numbers = #tpu.dot_dimension_numbers<[1], [0], [0], [1], [0, 0, 1, 1], [], []>} : vector<2x16xf32>, vector<16x64xf32>, vector<2x64xf32> -> vector<2x64xf32>
    %32 = arith.addf %30, %31 : vector<2x64xf32>
    %33 = vector.extract_strided_slice %32 {offsets = [0, 0], sizes = [2, 48], strides = [1, 1]} : vector<2x64xf32> to vector<2x48xf32>
    %34 = arith.negf %33 : vector<2x48xf32>
    %35 = math.exp %34 : vector<2x48xf32>
    %cst_16 = arith.constant 1.000000e+00 : f32
    %36 = vector.broadcast %cst_16 : f32 to vector<2x48xf32>
    %37 = arith.addf %36, %35 : vector<2x48xf32>
    %38 = arith.divf %36, %37 : vector<2x48xf32>
    %39 = vector.extract_strided_slice %32 {offsets = [0, 48], sizes = [2, 16], strides = [1, 1]} : vector<2x64xf32> to vector<2x16xf32>
    %40 = math.tanh %39 : vector<2x16xf32>
    %41 = vector.extract_strided_slice %38 {offsets = [0, 16], sizes = [2, 16], strides = [1, 1]} : vector<2x48xf32> to vector<2x16xf32>
    %42 = arith.mulf %41, %26 : vector<2x16xf32>
    %43 = vector.extract_strided_slice %38 {offsets = [0, 0], sizes = [2, 16], strides = [1, 1]} : vector<2x48xf32> to vector<2x16xf32>
    %44 = arith.mulf %43, %40 : vector<2x16xf32>
    %45 = arith.addf %42, %44 : vector<2x16xf32>
    %46 = vector.extract_strided_slice %38 {offsets = [0, 32], sizes = [2, 16], strides = [1, 1]} : vector<2x48xf32> to vector<2x16xf32>
    %47 = math.tanh %45 : vector<2x16xf32>
    %48 = arith.mulf %46, %47 : vector<2x16xf32>
    %49 = vector.extract_strided_slice %8 {offsets = [4, 0], sizes = [2, 64], strides = [1, 1]} : vector<16x64xf32> to vector<2x64xf32>
    %cst_17 = arith.constant dense<0.000000e+00> : vector<2x64xf32>
    %50 = tpu.matmul %48, %0, %cst_17 {dimension_numbers = #tpu.dot_dimension_numbers<[1], [0], [0], [1], [0, 0, 1, 1], [], []>} : vector<2x16xf32>, vector<16x64xf32>, vector<2x64xf32> -> vector<2x64xf32>
    %51 = arith.addf %49, %50 : vector<2x64xf32>
    %52 = vector.extract_strided_slice %51 {offsets = [0, 0], sizes = [2, 48], strides = [1, 1]} : vector<2x64xf32> to vector<2x48xf32>
    %53 = arith.negf %52 : vector<2x48xf32>
    %54 = math.exp %53 : vector<2x48xf32>
    %cst_18 = arith.constant 1.000000e+00 : f32
    %55 = vector.broadcast %cst_18 : f32 to vector<2x48xf32>
    %56 = arith.addf %55, %54 : vector<2x48xf32>
    %57 = arith.divf %55, %56 : vector<2x48xf32>
    %58 = vector.extract_strided_slice %51 {offsets = [0, 48], sizes = [2, 16], strides = [1, 1]} : vector<2x64xf32> to vector<2x16xf32>
    %59 = math.tanh %58 : vector<2x16xf32>
    %60 = vector.extract_strided_slice %57 {offsets = [0, 16], sizes = [2, 16], strides = [1, 1]} : vector<2x48xf32> to vector<2x16xf32>
    %61 = arith.mulf %60, %45 : vector<2x16xf32>
    %62 = vector.extract_strided_slice %57 {offsets = [0, 0], sizes = [2, 16], strides = [1, 1]} : vector<2x48xf32> to vector<2x16xf32>
    %63 = arith.mulf %62, %59 : vector<2x16xf32>
    %64 = arith.addf %61, %63 : vector<2x16xf32>
    %65 = vector.extract_strided_slice %57 {offsets = [0, 32], sizes = [2, 16], strides = [1, 1]} : vector<2x48xf32> to vector<2x16xf32>
    %66 = math.tanh %64 : vector<2x16xf32>
    %67 = arith.mulf %65, %66 : vector<2x16xf32>
    %68 = vector.extract_strided_slice %8 {offsets = [6, 0], sizes = [2, 64], strides = [1, 1]} : vector<16x64xf32> to vector<2x64xf32>
    %cst_19 = arith.constant dense<0.000000e+00> : vector<2x64xf32>
    %69 = tpu.matmul %67, %0, %cst_19 {dimension_numbers = #tpu.dot_dimension_numbers<[1], [0], [0], [1], [0, 0, 1, 1], [], []>} : vector<2x16xf32>, vector<16x64xf32>, vector<2x64xf32> -> vector<2x64xf32>
    %70 = arith.addf %68, %69 : vector<2x64xf32>
    %71 = vector.extract_strided_slice %70 {offsets = [0, 0], sizes = [2, 48], strides = [1, 1]} : vector<2x64xf32> to vector<2x48xf32>
    %72 = arith.negf %71 : vector<2x48xf32>
    %73 = math.exp %72 : vector<2x48xf32>
    %cst_20 = arith.constant 1.000000e+00 : f32
    %74 = vector.broadcast %cst_20 : f32 to vector<2x48xf32>
    %75 = arith.addf %74, %73 : vector<2x48xf32>
    %76 = arith.divf %74, %75 : vector<2x48xf32>
    %77 = vector.extract_strided_slice %70 {offsets = [0, 48], sizes = [2, 16], strides = [1, 1]} : vector<2x64xf32> to vector<2x16xf32>
    %78 = math.tanh %77 : vector<2x16xf32>
    %79 = vector.extract_strided_slice %76 {offsets = [0, 16], sizes = [2, 16], strides = [1, 1]} : vector<2x48xf32> to vector<2x16xf32>
    %80 = arith.mulf %79, %64 : vector<2x16xf32>
    %81 = vector.extract_strided_slice %76 {offsets = [0, 0], sizes = [2, 16], strides = [1, 1]} : vector<2x48xf32> to vector<2x16xf32>
    %82 = arith.mulf %81, %78 : vector<2x16xf32>
    %83 = arith.addf %80, %82 : vector<2x16xf32>
    %84 = vector.extract_strided_slice %76 {offsets = [0, 32], sizes = [2, 16], strides = [1, 1]} : vector<2x48xf32> to vector<2x16xf32>
    %85 = math.tanh %83 : vector<2x16xf32>
    %86 = arith.mulf %84, %85 : vector<2x16xf32>
    %87 = vector.extract_strided_slice %8 {offsets = [8, 0], sizes = [2, 64], strides = [1, 1]} : vector<16x64xf32> to vector<2x64xf32>
    %cst_21 = arith.constant dense<0.000000e+00> : vector<2x64xf32>
    %88 = tpu.matmul %86, %0, %cst_21 {dimension_numbers = #tpu.dot_dimension_numbers<[1], [0], [0], [1], [0, 0, 1, 1], [], []>} : vector<2x16xf32>, vector<16x64xf32>, vector<2x64xf32> -> vector<2x64xf32>
    %89 = arith.addf %87, %88 : vector<2x64xf32>
    %90 = vector.extract_strided_slice %89 {offsets = [0, 0], sizes = [2, 48], strides = [1, 1]} : vector<2x64xf32> to vector<2x48xf32>
    %91 = arith.negf %90 : vector<2x48xf32>
    %92 = math.exp %91 : vector<2x48xf32>
    %cst_22 = arith.constant 1.000000e+00 : f32
    %93 = vector.broadcast %cst_22 : f32 to vector<2x48xf32>
    %94 = arith.addf %93, %92 : vector<2x48xf32>
    %95 = arith.divf %93, %94 : vector<2x48xf32>
    %96 = vector.extract_strided_slice %89 {offsets = [0, 48], sizes = [2, 16], strides = [1, 1]} : vector<2x64xf32> to vector<2x16xf32>
    %97 = math.tanh %96 : vector<2x16xf32>
    %98 = vector.extract_strided_slice %95 {offsets = [0, 16], sizes = [2, 16], strides = [1, 1]} : vector<2x48xf32> to vector<2x16xf32>
    %99 = arith.mulf %98, %83 : vector<2x16xf32>
    %100 = vector.extract_strided_slice %95 {offsets = [0, 0], sizes = [2, 16], strides = [1, 1]} : vector<2x48xf32> to vector<2x16xf32>
    %101 = arith.mulf %100, %97 : vector<2x16xf32>
    %102 = arith.addf %99, %101 : vector<2x16xf32>
    %103 = vector.extract_strided_slice %95 {offsets = [0, 32], sizes = [2, 16], strides = [1, 1]} : vector<2x48xf32> to vector<2x16xf32>
    %104 = math.tanh %102 : vector<2x16xf32>
    %105 = arith.mulf %103, %104 : vector<2x16xf32>
    %106 = vector.extract_strided_slice %8 {offsets = [10, 0], sizes = [2, 64], strides = [1, 1]} : vector<16x64xf32> to vector<2x64xf32>
    %cst_23 = arith.constant dense<0.000000e+00> : vector<2x64xf32>
    %107 = tpu.matmul %105, %0, %cst_23 {dimension_numbers = #tpu.dot_dimension_numbers<[1], [0], [0], [1], [0, 0, 1, 1], [], []>} : vector<2x16xf32>, vector<16x64xf32>, vector<2x64xf32> -> vector<2x64xf32>
    %108 = arith.addf %106, %107 : vector<2x64xf32>
    %109 = vector.extract_strided_slice %108 {offsets = [0, 0], sizes = [2, 48], strides = [1, 1]} : vector<2x64xf32> to vector<2x48xf32>
    %110 = arith.negf %109 : vector<2x48xf32>
    %111 = math.exp %110 : vector<2x48xf32>
    %cst_24 = arith.constant 1.000000e+00 : f32
    %112 = vector.broadcast %cst_24 : f32 to vector<2x48xf32>
    %113 = arith.addf %112, %111 : vector<2x48xf32>
    %114 = arith.divf %112, %113 : vector<2x48xf32>
    %115 = vector.extract_strided_slice %108 {offsets = [0, 48], sizes = [2, 16], strides = [1, 1]} : vector<2x64xf32> to vector<2x16xf32>
    %116 = math.tanh %115 : vector<2x16xf32>
    %117 = vector.extract_strided_slice %114 {offsets = [0, 16], sizes = [2, 16], strides = [1, 1]} : vector<2x48xf32> to vector<2x16xf32>
    %118 = arith.mulf %117, %102 : vector<2x16xf32>
    %119 = vector.extract_strided_slice %114 {offsets = [0, 0], sizes = [2, 16], strides = [1, 1]} : vector<2x48xf32> to vector<2x16xf32>
    %120 = arith.mulf %119, %116 : vector<2x16xf32>
    %121 = arith.addf %118, %120 : vector<2x16xf32>
    %122 = vector.extract_strided_slice %114 {offsets = [0, 32], sizes = [2, 16], strides = [1, 1]} : vector<2x48xf32> to vector<2x16xf32>
    %123 = math.tanh %121 : vector<2x16xf32>
    %124 = arith.mulf %122, %123 : vector<2x16xf32>
    %125 = vector.extract_strided_slice %8 {offsets = [12, 0], sizes = [2, 64], strides = [1, 1]} : vector<16x64xf32> to vector<2x64xf32>
    %cst_25 = arith.constant dense<0.000000e+00> : vector<2x64xf32>
    %126 = tpu.matmul %124, %0, %cst_25 {dimension_numbers = #tpu.dot_dimension_numbers<[1], [0], [0], [1], [0, 0, 1, 1], [], []>} : vector<2x16xf32>, vector<16x64xf32>, vector<2x64xf32> -> vector<2x64xf32>
    %127 = arith.addf %125, %126 : vector<2x64xf32>
    %128 = vector.extract_strided_slice %127 {offsets = [0, 0], sizes = [2, 48], strides = [1, 1]} : vector<2x64xf32> to vector<2x48xf32>
    %129 = arith.negf %128 : vector<2x48xf32>
    %130 = math.exp %129 : vector<2x48xf32>
    %cst_26 = arith.constant 1.000000e+00 : f32
    %131 = vector.broadcast %cst_26 : f32 to vector<2x48xf32>
    %132 = arith.addf %131, %130 : vector<2x48xf32>
    %133 = arith.divf %131, %132 : vector<2x48xf32>
    %134 = vector.extract_strided_slice %127 {offsets = [0, 48], sizes = [2, 16], strides = [1, 1]} : vector<2x64xf32> to vector<2x16xf32>
    %135 = math.tanh %134 : vector<2x16xf32>
    %136 = vector.extract_strided_slice %133 {offsets = [0, 16], sizes = [2, 16], strides = [1, 1]} : vector<2x48xf32> to vector<2x16xf32>
    %137 = arith.mulf %136, %121 : vector<2x16xf32>
    %138 = vector.extract_strided_slice %133 {offsets = [0, 0], sizes = [2, 16], strides = [1, 1]} : vector<2x48xf32> to vector<2x16xf32>
    %139 = arith.mulf %138, %135 : vector<2x16xf32>
    %140 = arith.addf %137, %139 : vector<2x16xf32>
    %141 = vector.extract_strided_slice %133 {offsets = [0, 32], sizes = [2, 16], strides = [1, 1]} : vector<2x48xf32> to vector<2x16xf32>
    %142 = math.tanh %140 : vector<2x16xf32>
    %143 = arith.mulf %141, %142 : vector<2x16xf32>
    %144 = vector.extract_strided_slice %8 {offsets = [14, 0], sizes = [2, 64], strides = [1, 1]} : vector<16x64xf32> to vector<2x64xf32>
    %cst_27 = arith.constant dense<0.000000e+00> : vector<2x64xf32>
    %145 = tpu.matmul %143, %0, %cst_27 {dimension_numbers = #tpu.dot_dimension_numbers<[1], [0], [0], [1], [0, 0, 1, 1], [], []>} : vector<2x16xf32>, vector<16x64xf32>, vector<2x64xf32> -> vector<2x64xf32>
    %146 = arith.addf %144, %145 : vector<2x64xf32>
    %147 = vector.extract_strided_slice %146 {offsets = [0, 0], sizes = [2, 48], strides = [1, 1]} : vector<2x64xf32> to vector<2x48xf32>
    %148 = arith.negf %147 : vector<2x48xf32>
    %149 = math.exp %148 : vector<2x48xf32>
    %cst_28 = arith.constant 1.000000e+00 : f32
    %150 = vector.broadcast %cst_28 : f32 to vector<2x48xf32>
    %151 = arith.addf %150, %149 : vector<2x48xf32>
    %152 = arith.divf %150, %151 : vector<2x48xf32>
    %153 = vector.extract_strided_slice %146 {offsets = [0, 48], sizes = [2, 16], strides = [1, 1]} : vector<2x64xf32> to vector<2x16xf32>
    %154 = math.tanh %153 : vector<2x16xf32>
    %155 = vector.extract_strided_slice %152 {offsets = [0, 16], sizes = [2, 16], strides = [1, 1]} : vector<2x48xf32> to vector<2x16xf32>
    %156 = arith.mulf %155, %140 : vector<2x16xf32>
    %157 = vector.extract_strided_slice %152 {offsets = [0, 0], sizes = [2, 16], strides = [1, 1]} : vector<2x48xf32> to vector<2x16xf32>
    %158 = arith.mulf %157, %154 : vector<2x16xf32>
    %159 = arith.addf %156, %158 : vector<2x16xf32>
    %160 = vector.extract_strided_slice %152 {offsets = [0, 32], sizes = [2, 16], strides = [1, 1]} : vector<2x48xf32> to vector<2x16xf32>
    %161 = math.tanh %159 : vector<2x16xf32>
    %162 = arith.mulf %160, %161 : vector<2x16xf32>
    %163 = tpu.concatenate %29, %48, %67, %86, %105, %124, %143, %162 in 0 : vector<2x16xf32>, vector<2x16xf32>, vector<2x16xf32>, vector<2x16xf32>, vector<2x16xf32>, vector<2x16xf32>, vector<2x16xf32>, vector<2x16xf32> -> vector<16x16xf32>
    %cst_29 = arith.constant dense<0.000000e+00> : vector<16xf32>
    %164 = vector.multi_reduction <add>, %163, %cst_29 [1] : vector<16x16xf32> to vector<16xf32>
    %165 = vector.shape_cast %164 : vector<16xf32> to vector<16x1xf32>
    %cst_30 = arith.constant 1.600000e+01 : f32
    %166 = vector.broadcast %cst_30 : f32 to vector<16x1xf32>
    %167 = arith.divf %165, %166 : vector<16x1xf32>
    %168 = arith.mulf %163, %163 : vector<16x16xf32>
    %cst_31 = arith.constant dense<0.000000e+00> : vector<16xf32>
    %169 = vector.multi_reduction <add>, %168, %cst_31 [1] : vector<16x16xf32> to vector<16xf32>
    %170 = vector.shape_cast %169 : vector<16xf32> to vector<16x1xf32>
    %cst_32 = arith.constant 1.600000e+01 : f32
    %171 = vector.broadcast %cst_32 : f32 to vector<16x1xf32>
    %172 = arith.divf %170, %171 : vector<16x1xf32>
    %173 = arith.mulf %167, %167 : vector<16x1xf32>
    %174 = arith.subf %172, %173 : vector<16x1xf32>
    %175 = vector.broadcast %167 : vector<16x1xf32> to vector<16x16xf32>
    %176 = arith.subf %163, %175 : vector<16x16xf32>
    %cst_33 = arith.constant 9.99999974E-6 : f32
    %177 = vector.broadcast %cst_33 : f32 to vector<16x1xf32>
    %178 = arith.addf %174, %177 : vector<16x1xf32>
    %179 = math.rsqrt %178 : vector<16x1xf32>
    %180 = vector.broadcast %179 : vector<16x1xf32> to vector<16x16xf32>
    %181 = arith.mulf %176, %180 : vector<16x16xf32>
    %182 = vector.broadcast %1 : vector<1x16xf32> to vector<16x16xf32>
    %183 = arith.mulf %181, %182 : vector<16x16xf32>
    %184 = vector.broadcast %2 : vector<1x16xf32> to vector<16x16xf32>
    %185 = arith.addf %183, %184 : vector<16x16xf32>
    %cst_34 = arith.constant 0.000000e+00 : f32
    %186 = vector.broadcast %cst_34 : f32 to vector<16x16xf32>
    %187 = arith.maximumf %185, %186 : vector<16x16xf32>
    %188 = vector.extract_strided_slice %187 {offsets = [0, 0], sizes = [2, 16], strides = [1, 1]} : vector<16x16xf32> to vector<2x16xf32>
    %c0_35 = arith.constant 0 : index
    %c0_36 = arith.constant 0 : index
    %189 = vector.load %arg7[%c0_35, %c0_36] : memref<2x128xf32, #tpu.memory_space<vmem>>, vector<2x16xf32>
    tpu.vector_store %arg7[%c0_35, %c0_36], %188 {strides = array<i32>} : memref<2x128xf32, #tpu.memory_space<vmem>>, vector<2x16xf32>,
    %190 = vector.extract_strided_slice %187 {offsets = [2, 0], sizes = [2, 16], strides = [1, 1]} : vector<16x16xf32> to vector<2x16xf32>
    %c0_37 = arith.constant 0 : index
    %c16 = arith.constant 16 : index
    %191 = vector.load %arg7[%c0_37, %c16] : memref<2x128xf32, #tpu.memory_space<vmem>>, vector<2x16xf32>
    tpu.vector_store %arg7[%c0_37, %c16], %190 {strides = array<i32>} : memref<2x128xf32, #tpu.memory_space<vmem>>, vector<2x16xf32>,
    %192 = vector.extract_strided_slice %187 {offsets = [4, 0], sizes = [2, 16], strides = [1, 1]} : vector<16x16xf32> to vector<2x16xf32>
    %c0_38 = arith.constant 0 : index
    %c32 = arith.constant 32 : index
    %193 = vector.load %arg7[%c0_38, %c32] : memref<2x128xf32, #tpu.memory_space<vmem>>, vector<2x16xf32>
    tpu.vector_store %arg7[%c0_38, %c32], %192 {strides = array<i32>} : memref<2x128xf32, #tpu.memory_space<vmem>>, vector<2x16xf32>,
    %194 = vector.extract_strided_slice %187 {offsets = [6, 0], sizes = [2, 16], strides = [1, 1]} : vector<16x16xf32> to vector<2x16xf32>
    %c0_39 = arith.constant 0 : index
    %c48 = arith.constant 48 : index
    %195 = vector.load %arg7[%c0_39, %c48] : memref<2x128xf32, #tpu.memory_space<vmem>>, vector<2x16xf32>
    tpu.vector_store %arg7[%c0_39, %c48], %194 {strides = array<i32>} : memref<2x128xf32, #tpu.memory_space<vmem>>, vector<2x16xf32>,
    %196 = vector.extract_strided_slice %187 {offsets = [8, 0], sizes = [2, 16], strides = [1, 1]} : vector<16x16xf32> to vector<2x16xf32>
    %c0_40 = arith.constant 0 : index
    %c64 = arith.constant 64 : index
    %197 = vector.load %arg7[%c0_40, %c64] : memref<2x128xf32, #tpu.memory_space<vmem>>, vector<2x16xf32>
    tpu.vector_store %arg7[%c0_40, %c64], %196 {strides = array<i32>} : memref<2x128xf32, #tpu.memory_space<vmem>>, vector<2x16xf32>,
    %198 = vector.extract_strided_slice %187 {offsets = [10, 0], sizes = [2, 16], strides = [1, 1]} : vector<16x16xf32> to vector<2x16xf32>
    %c0_41 = arith.constant 0 : index
    %c80 = arith.constant 80 : index
    %199 = vector.load %arg7[%c0_41, %c80] : memref<2x128xf32, #tpu.memory_space<vmem>>, vector<2x16xf32>
    tpu.vector_store %arg7[%c0_41, %c80], %198 {strides = array<i32>} : memref<2x128xf32, #tpu.memory_space<vmem>>, vector<2x16xf32>,
    %200 = vector.extract_strided_slice %187 {offsets = [12, 0], sizes = [2, 16], strides = [1, 1]} : vector<16x16xf32> to vector<2x16xf32>
    %c0_42 = arith.constant 0 : index
    %c96 = arith.constant 96 : index
    %201 = vector.load %arg7[%c0_42, %c96] : memref<2x128xf32, #tpu.memory_space<vmem>>, vector<2x16xf32>
    tpu.vector_store %arg7[%c0_42, %c96], %200 {strides = array<i32>} : memref<2x128xf32, #tpu.memory_space<vmem>>, vector<2x16xf32>,
    %202 = vector.extract_strided_slice %187 {offsets = [14, 0], sizes = [2, 16], strides = [1, 1]} : vector<16x16xf32> to vector<2x16xf32>
    %c0_43 = arith.constant 0 : index
    %c112 = arith.constant 112 : index
    %203 = vector.load %arg7[%c0_43, %c112] : memref<2x128xf32, #tpu.memory_space<vmem>>, vector<2x16xf32>
    tpu.vector_store %arg7[%c0_43, %c112], %202 {strides = array<i32>} : memref<2x128xf32, #tpu.memory_space<vmem>>, vector<2x16xf32>,
    return
  }
  func.func @transform_0(%arg0: i32) -> (i32, i32) {
    %c0_i32 = arith.constant 0 : i32
    %c0_i32_0 = arith.constant 0 : i32
    %c0_i32_1 = arith.constant 0 : i32
    return %c0_i32, %c0_i32_0 : i32, i32
  }
  func.func @transform_1(%arg0: i32) -> (i32, i32) {
    %c0_i32 = arith.constant 0 : i32
    %c0_i32_0 = arith.constant 0 : i32
    %c0_i32_1 = arith.constant 0 : i32
    return %c0_i32, %c0_i32_0 : i32, i32
  }
  func.func @transform_2(%arg0: i32) -> (i32, i32) {
    %c0_i32 = arith.constant 0 : i32
    %c0_i32_0 = arith.constant 0 : i32
    %c0_i32_1 = arith.constant 0 : i32
    return %c0_i32, %c0_i32_0 : i32, i32
  }
  func.func @transform_3(%arg0: i32) -> (i32, i32) {
    %c0_i32 = arith.constant 0 : i32
    %c0_i32_0 = arith.constant 0 : i32
    %c0_i32_1 = arith.constant 0 : i32
    return %c0_i32, %c0_i32_0 : i32, i32
  }
  func.func @transform_4(%arg0: i32) -> (i32, i32) {
    %c0_i32 = arith.constant 0 : i32
    %c0_i32_0 = arith.constant 0 : i32
    %c0_i32_1 = arith.constant 0 : i32
    return %c0_i32, %c0_i32_0 : i32, i32
  }
  func.func @transform_5(%arg0: i32) -> (i32, i32) {
    %c0_i32 = arith.constant 0 : i32
    %c0_i32_0 = arith.constant 0 : i32
    %c0_i32_1 = arith.constant 0 : i32
    return %c0_i32, %c0_i32_0 : i32, i32
  }
  func.func @transform_6(%arg0: i32) -> (i32, i32) {
    %c0_i32 = arith.constant 0 : i32
    %c0_i32_0 = arith.constant 0 : i32
    %c0_i32_1 = arith.constant 0 : i32
    return %c0_i32, %c0_i32_0 : i32, i32
  }
}

</mosaic_0001>

<llo_original>
// kernel: lstm_module_forward.1
$region0: #{lstm_module_forward.1}
  #allocation0 [shape = 'u32[]', space=smem, size = 0x4, offset = 0x4, fixed_abs, tag = 'smem constant byte address 0x4 - core index']
  #allocation1 [shape = 'u32[144,128]{1,0:T(1,128)}', space=vmem, size = 0x12000, scoped, tag = 'internal scratch']
  %s0 = inlined_call_operand.vmem [shape: f32[16,32], index: 0, kind: input, shape index: {}]
  %s1 = inlined_call_operand.vmem [shape: f32[32,64], index: 1, kind: input, shape index: {}]
  %s2 = inlined_call_operand.hbm [shape: f32[16,64], index: 2, kind: input, shape index: {}]
  %s3 = inlined_call_operand.vmem [shape: f32[1,64], index: 3, kind: input, shape index: {}]
  %s4 = inlined_call_operand.vmem [shape: f32[1,16], index: 4, kind: input, shape index: {}]
  %s5 = inlined_call_operand.vmem [shape: f32[1,16], index: 5, kind: input, shape index: {}]
  %s6 = inlined_call_operand.vmem [shape: f32[2,128], index: 6, kind: output, shape index: {}]
  %s7 = sld [smem:[#allocation0]]
  $region38: #{lstm_module_forward.1} parent=0
    _
  %s9 = ssub.s32 1, %s7
  %s10 = scalar_select 0, %s9, %s7
  $region1: #{lstm_module_forward.1} parent=0
    #allocation2 [shape = 'u8[8192]{0}', space=vmem, size = 0x2000, scoped, tag = 'input window, operand 2, single buffered']
    #allocation3 [shape = 's32[1]{0}', space=sflag, size = 0x4, scoped, tag = 'scoped memory for lstm_module_forward.1']
    %11 = vsyncpa [#allocation3], 0
    // Predicated region
    $region2: #{lstm_module_forward.1} parent=1 // pred_check
      _
    $region3: #{lstm_module_forward.1} parent=1 // pred_check_branch
      %13 = sbr.rel (0) target = $region5
    $region4: #{lstm_module_forward.1} parent=1 // pred_region
      _
    $region5: #{lstm_module_forward.1} parent=1 // pred_fallthru
      _
    // Predicated region
    $region6: #{lstm_module_forward.1} parent=1 // pred_check
      _
    $region7: #{lstm_module_forward.1} parent=1 // pred_check_branch
      %15 = sbr.rel (0) target = $region9
    $region8: #{lstm_module_forward.1} parent=1 // pred_region
      _
    $region9: #{lstm_module_forward.1} parent=1 // pred_fallthru
      _
    // Predicated region
    $region10: #{lstm_module_forward.1} parent=1 // pred_check
      _
    $region11: #{lstm_module_forward.1} parent=1 // pred_check_branch
      %17 = sbr.rel (0) target = $region13
    $region12: #{lstm_module_forward.1} parent=1 // pred_region
      %s19 = ssub.s32 256, 256
      %20 = vsyncadd [#allocation3], %s19
      %s21 = sshll.u32 [#allocation2], 4
      %s22 = int_to_ptr.vmem [resolvable:$true] %s21
      %27 = dma.hbm_to_vmem [thread:$0]  %s2, 256, %s22, [#allocation3], 128, 128, 8
    $region13: #{lstm_module_forward.1} parent=1 // pred_fallthru
      _
    // Predicated region
    $region14: #{lstm_module_forward.1} parent=1 // pred_check
      _
    $region15: #{lstm_module_forward.1} parent=1 // pred_check_branch
      %29 = sbr.rel (0) target = $region17
    $region16: #{lstm_module_forward.1} parent=1 // pred_region
      _
    $region17: #{lstm_module_forward.1} parent=1 // pred_fallthru
      _
    // Predicated region
    $region18: #{lstm_module_forward.1} parent=1 // pred_check
      _
    $region19: #{lstm_module_forward.1} parent=1 // pred_check_branch
      %31 = sbr.rel (0) target = $region21
    $region20: #{lstm_module_forward.1} parent=1 // pred_region
      _
    $region21: #{lstm_module_forward.1} parent=1 // pred_fallthru
      _
    // Predicated region
    $region22: #{lstm_module_forward.1} parent=1 // pred_check
      _
    $region23: #{lstm_module_forward.1} parent=1 // pred_check_branch
      %33 = sbr.rel (0) target = $region25
    $region24: #{lstm_module_forward.1} parent=1 // pred_region
      _
    $region25: #{lstm_module_forward.1} parent=1 // pred_fallthru
      _
    // Predicated region
    $region26: #{lstm_module_forward.1} parent=1 // pred_check
      _
    $region27: #{lstm_module_forward.1} parent=1 // pred_check_branch
      %35 = sbr.rel (0) target = $region29
    $region28: #{lstm_module_forward.1} parent=1 // pred_region
      %36 = dma.done [#allocation3], 256
    $region29: #{lstm_module_forward.1} parent=1 // pred_fallthru
      _
    %v37 = vld [vmem:[#allocation2] sm:$0xff]
    %v38 = vld [vmem:[#allocation2 + $0x8] sm:$0xff]
    %v39 = vld [vmem:[%s4] sm:$0x1]
    %v40 = vld [vmem:[%s5] sm:$0x1]
    %v41 = vld [vmem:[%s0] sm:$0xff]
    %v42 = vld [vmem:[%s0 + $0x8] sm:$0xff]
    %v43 = vld [vmem:[%s1] sm:$0xff]
    %v44 = vld [vmem:[%s1 + $0x8] sm:$0xff]
    %v45 = vld [vmem:[%s1 + $0x10] sm:$0xff]
    %v46 = vld [vmem:[%s1 + $0x18] sm:$0xff]
    %v47 = vld [vmem:[%s3] sm:$0x1]
    %v49 = vlaneseq
    %v50 = vshrl.u32 %v49, 7
    %v51 = vsub.s32 0, %v50
    %v52 = vrot.slane %v47, %v51
    %vm54 = vcmask 261120
    %v56 = vsel %vm54, %v41, 0
    %v59 = vsel %vm54, %v42, 0
    %61 = vmatprep.subr.mxu0 0.0
    %62 = vmatpush1.msra.mxu0 0.0
    %63 = vmatprep.subr.mxu0 0.0
    %64 = vmatpush1.msra.mxu0 0.0
    %65 = vmatprep.subr.mxu0 0.0
    %66 = vmatpush1.msra.mxu0 0.0
    %67 = vmatprep.subr.mxu0 0.0
    %68 = vmatpush1.msra.mxu0 0.0
    %69 = vmatprep.subr.mxu0 0.0
    %70 = vmatpush1.msra.mxu0 0.0
    %71 = vmatprep.subr.mxu0 0.0
    %72 = vmatpush1.msra.mxu0 0.0
    %73 = vmatprep.subr.mxu0 0.0
    %74 = vmatpush1.msra.mxu0 0.0
    %75 = vmatprep.subr.mxu0 0.0
    %76 = vmatpush1.msra.mxu0 0.0
    %77 = vmatprep.subr.mxu0 0.0
    %78 = vmatpush1.msra.mxu0 0.0
    %79 = vmatprep.subr.mxu0 0.0
    %80 = vmatpush1.msra.mxu0 0.0
    %81 = vmatprep.subr.mxu0 0.0
    %82 = vmatpush1.msra.mxu0 0.0
    %83 = vmatprep.subr.mxu0 0.0
    %84 = vmatpush1.msra.mxu0 0.0
    %85 = vmatprep.subr.mxu0 0.0
    %86 = vmatpush1.msra.mxu0 %v46
    %87 = vmatprep.subr.mxu0 0.0
    %88 = vmatpush1.msra.mxu0 %v45
    %89 = vmatprep.subr.mxu0 0.0
    %90 = vmatpush1.msra.mxu0 %v44
    %91 = vmatprep.subr.mxu0 0.0
    %92 = vmatpush1.msra.mxu0 %v43
    %93 = vmatprep.subr.mxu0 0.0
    %94 = vmatpush2.msra.mxu0 0.0
    %95 = vmatprep.subr.mxu0 0.0
    %96 = vmatpush2.msra.mxu0 0.0
    %97 = vmatprep.subr.mxu0 0.0
    %98 = vmatpush2.msra.mxu0 0.0
    %99 = vmatprep.subr.mxu0 0.0
    %100 = vmatpush2.msra.mxu0 0.0
    %101 = vmatprep.subr.mxu0 0.0
    %102 = vmatpush2.msra.mxu0 0.0
    %103 = vmatprep.subr.mxu0 0.0
    %104 = vmatpush2.msra.mxu0 0.0
    %105 = vmatprep.subr.mxu0 0.0
    %106 = vmatpush2.msra.mxu0 0.0
    %107 = vmatprep.subr.mxu0 0.0
    %108 = vmatpush2.msra.mxu0 0.0
    %109 = vmatprep.subr.mxu0 0.0
    %110 = vmatpush2.msra.mxu0 0.0
    %111 = vmatprep.subr.mxu0 0.0
    %112 = vmatpush2.msra.mxu0 0.0
    %113 = vmatprep.subr.mxu0 0.0
    %114 = vmatpush2.msra.mxu0 0.0
    %115 = vmatprep.subr.mxu0 0.0
    %116 = vmatpush2.msra.mxu0 0.0
    %117 = vmatprep.subr.mxu0 0.0
    %118 = vmatpush2.msra.mxu0 0.0
    %119 = vmatprep.subr.mxu0 0.0
    %120 = vmatpush2.msra.mxu0 0.0
    %121 = vmatprep.subr.mxu0 0.0
    %122 = vmatpush2.msra.mxu0 0.0
    %123 = vmatprep.subr.mxu0 0.0
    %124 = vmatpush2.msra.mxu0 0.0
    %125 = vmatprep.mubr.f32.mxu0 0.0
    %126 = vmatmul.mubr.f32.gmra.mxu0 %v56
    %v127 = vpop.f32.mrf.mxu0
    %v128 = vadd.f32 %v52, %v127
    %v129 = vpop.f32.mrf.mxu0
    %130 = vmatprep.mubr.f32.mxu0 0.0
    %131 = vmatmul.mubr.f32.gmra.mxu0 %v59
    %v132 = vpop.f32.mrf.mxu0
    %v133 = vadd.f32 %v52, %v132
    %v134 = vpop.f32.mrf.mxu0
    %135 = vdwg.mxu0
    %vm136 = vcmask 130048
    %v138 = vsel %vm136, 0.0, 0
    %140 = vmatprep.subr.mxu0 0.0
    %141 = vmatpush1.msra.mxu0 0.0
    %142 = vmatprep.subr.mxu0 0.0
    %143 = vmatpush1.msra.mxu0 0.0
    %144 = vmatprep.subr.mxu0 0.0
    %145 = vmatpush1.msra.mxu0 0.0
    %146 = vmatprep.subr.mxu0 0.0
    %147 = vmatpush1.msra.mxu0 0.0
    %148 = vmatprep.subr.mxu0 0.0
    %149 = vmatpush1.msra.mxu0 0.0
    %150 = vmatprep.subr.mxu0 0.0
    %151 = vmatpush1.msra.mxu0 0.0
    %152 = vmatprep.subr.mxu0 0.0
    %153 = vmatpush1.msra.mxu0 0.0
    %154 = vmatprep.subr.mxu0 0.0
    %155 = vmatpush1.msra.mxu0 0.0
    %156 = vmatprep.subr.mxu0 0.0
    %157 = vmatpush1.msra.mxu0 0.0
    %158 = vmatprep.subr.mxu0 0.0
    %159 = vmatpush1.msra.mxu0 0.0
    %160 = vmatprep.subr.mxu0 0.0
    %161 = vmatpush1.msra.mxu0 0.0
    %162 = vmatprep.subr.mxu0 0.0
    %163 = vmatpush1.msra.mxu0 0.0
    %164 = vmatprep.subr.mxu0 0.0
    %165 = vmatpush1.msra.mxu0 0.0
    %166 = vmatprep.subr.mxu0 0.0
    %167 = vmatpush1.msra.mxu0 0.0
    %168 = vmatprep.subr.mxu0 0.0
    %169 = vmatpush1.msra.mxu0 %v38
    %170 = vmatprep.subr.mxu0 0.0
    %171 = vmatpush1.msra.mxu0 %v37
    %172 = vmatprep.subr.mxu0 0.0
    %173 = vmatpush2.msra.mxu0 0.0
    %174 = vmatprep.subr.mxu0 0.0
    %175 = vmatpush2.msra.mxu0 0.0
    %176 = vmatprep.subr.mxu0 0.0
    %177 = vmatpush2.msra.mxu0 0.0
    %178 = vmatprep.subr.mxu0 0.0
    %179 = vmatpush2.msra.mxu0 0.0
    %180 = vmatprep.subr.mxu0 0.0
    %181 = vmatpush2.msra.mxu0 0.0
    %182 = vmatprep.subr.mxu0 0.0
    %183 = vmatpush2.msra.mxu0 0.0
    %184 = vmatprep.subr.mxu0 0.0
    %185 = vmatpush2.msra.mxu0 0.0
    %186 = vmatprep.subr.mxu0 0.0
    %187 = vmatpush2.msra.mxu0 0.0
    %188 = vmatprep.subr.mxu0 0.0
    %189 = vmatpush2.msra.mxu0 0.0
    %190 = vmatprep.subr.mxu0 0.0
    %191 = vmatpush2.msra.mxu0 0.0
    %192 = vmatprep.subr.mxu0 0.0
    %193 = vmatpush2.msra.mxu0 0.0
    %194 = vmatprep.subr.mxu0 0.0
    %195 = vmatpush2.msra.mxu0 0.0
    %196 = vmatprep.subr.mxu0 0.0
    %197 = vmatpush2.msra.mxu0 0.0
    %198 = vmatprep.subr.mxu0 0.0
    %199 = vmatpush2.msra.mxu0 0.0
    %200 = vmatprep.subr.mxu0 0.0
    %201 = vmatpush2.msra.mxu0 0.0
    %202 = vmatprep.subr.mxu0 0.0
    %203 = vmatpush2.msra.mxu0 0.0
    %204 = vmatprep.mubr.f32.mxu0 0.0
    %205 = vmatmul.mubr.f32.gmra.mxu0 %v138
    %v206 = vpop.f32.mrf.mxu0
    %v207 = vadd.f32 0.0, %v206
    %v208 = vpop.f32.mrf.mxu0
    %209 = vdwg.mxu0
    %v210 = vadd.f32 %v128, %v207
    %v211 = vxor.u32 %v210, 2147483648
    %v212 = vmul.f32 %v211, 1.442695
    %v213 = vpow.pop %v212
    %v214 = vadd.f32 %v213, 1.0
    %v215 = vrcp.pop %v214
    %v216 = vmul.f32 1.0, %v215
    %v217 = vtanh.pop %v210
    %v218 = vmul.f32 %v216, 0.0
    %220 = vrot.lane.b32.xlu0 %v217, 80
    %v221 = vpop.permute.xlu0 %220
    %v223 = vmul.f32 %v216, %v221
    %225 = vrot.lane.b32.xlu0 %v223, 16
    %v226 = vpop.permute.xlu0 %225
    %v228 = vadd.f32 %v218, %v226
    %v229 = vtanh.pop %v228
    %231 = vrot.lane.b32.xlu0 %v229, 16
    %v232 = vpop.permute.xlu0 %231
    %v234 = vmul.f32 %v216, %v232
    %236 = vrot.lane.b32.xlu0 %v234, 96
    %v237 = vpop.permute.xlu0 %236
    %v238 = vsel %vm136, %v237, 0
    %240 = vmatprep.subr.mxu0 0.0
    %241 = vmatpush1.msra.mxu0 0.0
    %242 = vmatprep.subr.mxu0 0.0
    %243 = vmatpush1.msra.mxu0 0.0
    %244 = vmatprep.subr.mxu0 0.0
    %245 = vmatpush1.msra.mxu0 0.0
    %246 = vmatprep.subr.mxu0 0.0
    %247 = vmatpush1.msra.mxu0 0.0
    %248 = vmatprep.subr.mxu0 0.0
    %249 = vmatpush1.msra.mxu0 0.0
    %250 = vmatprep.subr.mxu0 0.0
    %251 = vmatpush1.msra.mxu0 0.0
    %252 = vmatprep.subr.mxu0 0.0
    %253 = vmatpush1.msra.mxu0 0.0
    %254 = vmatprep.subr.mxu0 0.0
    %255 = vmatpush1.msra.mxu0 0.0
    %256 = vmatprep.subr.mxu0 0.0
    %257 = vmatpush1.msra.mxu0 0.0
    %258 = vmatprep.subr.mxu0 0.0
    %259 = vmatpush1.msra.mxu0 0.0
    %260 = vmatprep.subr.mxu0 0.0
    %261 = vmatpush1.msra.mxu0 0.0
    %262 = vmatprep.subr.mxu0 0.0
    %263 = vmatpush1.msra.mxu0 0.0
    %264 = vmatprep.subr.mxu0 0.0
    %265 = vmatpush1.msra.mxu0 0.0
    %266 = vmatprep.subr.mxu0 0.0
    %267 = vmatpush1.msra.mxu0 0.0
    %268 = vmatprep.subr.mxu0 0.0
    %269 = vmatpush1.msra.mxu0 %v38
    %270 = vmatprep.subr.mxu0 0.0
    %271 = vmatpush1.msra.mxu0 %v37
    %272 = vmatprep.subr.mxu0 0.0
    %273 = vmatpush2.msra.mxu0 0.0
    %274 = vmatprep.subr.mxu0 0.0
    %275 = vmatpush2.msra.mxu0 0.0
    %276 = vmatprep.subr.mxu0 0.0
    %277 = vmatpush2.msra.mxu0 0.0
    %278 = vmatprep.subr.mxu0 0.0
    %279 = vmatpush2.msra.mxu0 0.0
    %280 = vmatprep.subr.mxu0 0.0
    %281 = vmatpush2.msra.mxu0 0.0
    %282 = vmatprep.subr.mxu0 0.0
    %283 = vmatpush2.msra.mxu0 0.0
    %284 = vmatprep.subr.mxu0 0.0
    %285 = vmatpush2.msra.mxu0 0.0
    %286 = vmatprep.subr.mxu0 0.0
    %287 = vmatpush2.msra.mxu0 0.0
    %288 = vmatprep.subr.mxu0 0.0
    %289 = vmatpush2.msra.mxu0 0.0
    %290 = vmatprep.subr.mxu0 0.0
    %291 = vmatpush2.msra.mxu0 0.0
    %292 = vmatprep.subr.mxu0 0.0
    %293 = vmatpush2.msra.mxu0 0.0
    %294 = vmatprep.subr.mxu0 0.0
    %295 = vmatpush2.msra.mxu0 0.0
    %296 = vmatprep.subr.mxu0 0.0
    %297 = vmatpush2.msra.mxu0 0.0
    %298 = vmatprep.subr.mxu0 0.0
    %299 = vmatpush2.msra.mxu0 0.0
    %300 = vmatprep.subr.mxu0 0.0
    %301 = vmatpush2.msra.mxu0 0.0
    %302 = vmatprep.subr.mxu0 0.0
    %303 = vmatpush2.msra.mxu0 0.0
    %304 = vmatprep.mubr.f32.mxu0 0.0
    %305 = vmatmul.mubr.f32.gmra.mxu0 %v238
    %v306 = vpop.f32.mrf.mxu0
    %v307 = vadd.f32 0.0, %v306
    %v308 = vpop.f32.mrf.mxu0
    %309 = vdwg.mxu0
    %v311 = vrot.slane %v307, 6
    %v313 = vadd.f32 %v128, %v311
    %v314 = vxor.u32 %v313, 2147483648
    %v315 = vmul.f32 %v314, 1.442695
    %v316 = vpow.pop %v315
    %v317 = vadd.f32 %v316, 1.0
    %v318 = vrcp.pop %v317
    %v319 = vmul.f32 1.0, %v318
    %v320 = vtanh.pop %v313
    %v322 = vrot.slane %v228, 6
    %v324 = vmul.f32 %v319, %v322
    %326 = vrot.lane.b32.xlu0 %v320, 80
    %v327 = vpop.permute.xlu0 %326
    %v329 = vmul.f32 %v319, %v327
    %331 = vrot.lane.b32.xlu0 %v329, 16
    %v332 = vpop.permute.xlu0 %331
    %v334 = vadd.f32 %v324, %v332
    %v335 = vtanh.pop %v334
    %337 = vrot.lane.b32.xlu0 %v335, 16
    %v338 = vpop.permute.xlu0 %337
    %v340 = vmul.f32 %v319, %v338
    %v342 = vrot.slane %v340, 2
    %343 = vrot.lane.b32.xlu0 %v342, 96
    %v344 = vpop.permute.xlu0 %343
    %v345 = vsel %vm136, %v344, 0
    %347 = vmatprep.subr.mxu0 0.0
    %348 = vmatpush1.msra.mxu0 0.0
    %349 = vmatprep.subr.mxu0 0.0
    %350 = vmatpush1.msra.mxu0 0.0
    %351 = vmatprep.subr.mxu0 0.0
    %352 = vmatpush1.msra.mxu0 0.0
    %353 = vmatprep.subr.mxu0 0.0
    %354 = vmatpush1.msra.mxu0 0.0
    %355 = vmatprep.subr.mxu0 0.0
    %356 = vmatpush1.msra.mxu0 0.0
    %357 = vmatprep.subr.mxu0 0.0
    %358 = vmatpush1.msra.mxu0 0.0
    %359 = vmatprep.subr.mxu0 0.0
    %360 = vmatpush1.msra.mxu0 0.0
    %361 = vmatprep.subr.mxu0 0.0
    %362 = vmatpush1.msra.mxu0 0.0
    %363 = vmatprep.subr.mxu0 0.0
    %364 = vmatpush1.msra.mxu0 0.0
    %365 = vmatprep.subr.mxu0 0.0
    %366 = vmatpush1.msra.mxu0 0.0
    %367 = vmatprep.subr.mxu0 0.0
    %368 = vmatpush1.msra.mxu0 0.0
    %369 = vmatprep.subr.mxu0 0.0
    %370 = vmatpush1.msra.mxu0 0.0
    %371 = vmatprep.subr.mxu0 0.0
    %372 = vmatpush1.msra.mxu0 0.0
    %373 = vmatprep.subr.mxu0 0.0
    %374 = vmatpush1.msra.mxu0 0.0
    %375 = vmatprep.subr.mxu0 0.0
    %376 = vmatpush1.msra.mxu0 %v38
    %377 = vmatprep.subr.mxu0 0.0
    %378 = vmatpush1.msra.mxu0 %v37
    %379 = vmatprep.subr.mxu0 0.0
    %380 = vmatpush2.msra.mxu0 0.0
    %381 = vmatprep.subr.mxu0 0.0
    %382 = vmatpush2.msra.mxu0 0.0
    %383 = vmatprep.subr.mxu0 0.0
    %384 = vmatpush2.msra.mxu0 0.0
    %385 = vmatprep.subr.mxu0 0.0
    %386 = vmatpush2.msra.mxu0 0.0
    %387 = vmatprep.subr.mxu0 0.0
    %388 = vmatpush2.msra.mxu0 0.0
    %389 = vmatprep.subr.mxu0 0.0
    %390 = vmatpush2.msra.mxu0 0.0
    %391 = vmatprep.subr.mxu0 0.0
    %392 = vmatpush2.msra.mxu0 0.0
    %393 = vmatprep.subr.mxu0 0.0
    %394 = vmatpush2.msra.mxu0 0.0
    %395 = vmatprep.subr.mxu0 0.0
    %396 = vmatpush2.msra.mxu0 0.0
    %397 = vmatprep.subr.mxu0 0.0
    %398 = vmatpush2.msra.mxu0 0.0
    %399 = vmatprep.subr.mxu0 0.0
    %400 = vmatpush2.msra.mxu0 0.0
    %401 = vmatprep.subr.mxu0 0.0
    %402 = vmatpush2.msra.mxu0 0.0
    %403 = vmatprep.subr.mxu0 0.0
    %404 = vmatpush2.msra.mxu0 0.0
    %405 = vmatprep.subr.mxu0 0.0
    %406 = vmatpush2.msra.mxu0 0.0
    %407 = vmatprep.subr.mxu0 0.0
    %408 = vmatpush2.msra.mxu0 0.0
    %409 = vmatprep.subr.mxu0 0.0
    %410 = vmatpush2.msra.mxu0 0.0
    %411 = vmatprep.mubr.f32.mxu0 0.0
    %412 = vmatmul.mubr.f32.gmra.mxu0 %v345
    %v413 = vpop.f32.mrf.mxu0
    %v414 = vadd.f32 0.0, %v413
    %v415 = vpop.f32.mrf.mxu0
    %416 = vdwg.mxu0
    %v418 = vrot.slane %v414, 4
    %v420 = vadd.f32 %v128, %v418
    %v421 = vxor.u32 %v420, 2147483648
    %v422 = vmul.f32 %v421, 1.442695
    %v423 = vpow.pop %v422
    %v424 = vadd.f32 %v423, 1.0
    %v425 = vrcp.pop %v424
    %v426 = vmul.f32 1.0, %v425
    %v427 = vtanh.pop %v420
    %v429 = vrot.slane %v334, 6
    %v431 = vmul.f32 %v426, %v429
    %433 = vrot.lane.b32.xlu0 %v427, 80
    %v434 = vpop.permute.xlu0 %433
    %v436 = vmul.f32 %v426, %v434
    %438 = vrot.lane.b32.xlu0 %v436, 16
    %v439 = vpop.permute.xlu0 %438
    %v441 = vadd.f32 %v431, %v439
    %v442 = vtanh.pop %v441
    %444 = vrot.lane.b32.xlu0 %v442, 16
    %v445 = vpop.permute.xlu0 %444
    %v447 = vmul.f32 %v426, %v445
    %v449 = vrot.slane %v447, 4
    %450 = vrot.lane.b32.xlu0 %v449, 96
    %v451 = vpop.permute.xlu0 %450
    %v452 = vsel %vm136, %v451, 0
    %454 = vmatprep.subr.mxu0 0.0
    %455 = vmatpush1.msra.mxu0 0.0
    %456 = vmatprep.subr.mxu0 0.0
    %457 = vmatpush1.msra.mxu0 0.0
    %458 = vmatprep.subr.mxu0 0.0
    %459 = vmatpush1.msra.mxu0 0.0
    %460 = vmatprep.subr.mxu0 0.0
    %461 = vmatpush1.msra.mxu0 0.0
    %462 = vmatprep.subr.mxu0 0.0
    %463 = vmatpush1.msra.mxu0 0.0
    %464 = vmatprep.subr.mxu0 0.0
    %465 = vmatpush1.msra.mxu0 0.0
    %466 = vmatprep.subr.mxu0 0.0
    %467 = vmatpush1.msra.mxu0 0.0
    %468 = vmatprep.subr.mxu0 0.0
    %469 = vmatpush1.msra.mxu0 0.0
    %470 = vmatprep.subr.mxu0 0.0
    %471 = vmatpush1.msra.mxu0 0.0
    %472 = vmatprep.subr.mxu0 0.0
    %473 = vmatpush1.msra.mxu0 0.0
    %474 = vmatprep.subr.mxu0 0.0
    %475 = vmatpush1.msra.mxu0 0.0
    %476 = vmatprep.subr.mxu0 0.0
    %477 = vmatpush1.msra.mxu0 0.0
    %478 = vmatprep.subr.mxu0 0.0
    %479 = vmatpush1.msra.mxu0 0.0
    %480 = vmatprep.subr.mxu0 0.0
    %481 = vmatpush1.msra.mxu0 0.0
    %482 = vmatprep.subr.mxu0 0.0
    %483 = vmatpush1.msra.mxu0 %v38
    %484 = vmatprep.subr.mxu0 0.0
    %485 = vmatpush1.msra.mxu0 %v37
    %486 = vmatprep.subr.mxu0 0.0
    %487 = vmatpush2.msra.mxu0 0.0
    %488 = vmatprep.subr.mxu0 0.0
    %489 = vmatpush2.msra.mxu0 0.0
    %490 = vmatprep.subr.mxu0 0.0
    %491 = vmatpush2.msra.mxu0 0.0
    %492 = vmatprep.subr.mxu0 0.0
    %493 = vmatpush2.msra.mxu0 0.0
    %494 = vmatprep.subr.mxu0 0.0
    %495 = vmatpush2.msra.mxu0 0.0
    %496 = vmatprep.subr.mxu0 0.0
    %497 = vmatpush2.msra.mxu0 0.0
    %498 = vmatprep.subr.mxu0 0.0
    %499 = vmatpush2.msra.mxu0 0.0
    %500 = vmatprep.subr.mxu0 0.0
    %501 = vmatpush2.msra.mxu0 0.0
    %502 = vmatprep.subr.mxu0 0.0
    %503 = vmatpush2.msra.mxu0 0.0
    %504 = vmatprep.subr.mxu0 0.0
    %505 = vmatpush2.msra.mxu0 0.0
    %506 = vmatprep.subr.mxu0 0.0
    %507 = vmatpush2.msra.mxu0 0.0
    %508 = vmatprep.subr.mxu0 0.0
    %509 = vmatpush2.msra.mxu0 0.0
    %510 = vmatprep.subr.mxu0 0.0
    %511 = vmatpush2.msra.mxu0 0.0
    %512 = vmatprep.subr.mxu0 0.0
    %513 = vmatpush2.msra.mxu0 0.0
    %514 = vmatprep.subr.mxu0 0.0
    %515 = vmatpush2.msra.mxu0 0.0
    %516 = vmatprep.subr.mxu0 0.0
    %517 = vmatpush2.msra.mxu0 0.0
    %518 = vmatprep.mubr.f32.mxu0 0.0
    %519 = vmatmul.mubr.f32.gmra.mxu0 %v452
    %v520 = vpop.f32.mrf.mxu0
    %v521 = vadd.f32 0.0, %v520
    %v522 = vpop.f32.mrf.mxu0
    %523 = vdwg.mxu0
    %v525 = vrot.slane %v521, 2
    %v527 = vadd.f32 %v128, %v525
    %v528 = vxor.u32 %v527, 2147483648
    %v529 = vmul.f32 %v528, 1.442695
    %v530 = vpow.pop %v529
    %v531 = vadd.f32 %v530, 1.0
    %v532 = vrcp.pop %v531
    %v533 = vmul.f32 1.0, %v532
    %v534 = vtanh.pop %v527
    %v536 = vrot.slane %v441, 6
    %v538 = vmul.f32 %v533, %v536
    %540 = vrot.lane.b32.xlu0 %v534, 80
    %v541 = vpop.permute.xlu0 %540
    %v543 = vmul.f32 %v533, %v541
    %545 = vrot.lane.b32.xlu0 %v543, 16
    %v546 = vpop.permute.xlu0 %545
    %v548 = vadd.f32 %v538, %v546
    %v549 = vtanh.pop %v548
    %551 = vrot.lane.b32.xlu0 %v549, 16
    %v552 = vpop.permute.xlu0 %551
    %v554 = vmul.f32 %v533, %v552
    %v556 = vrot.slane %v554, 6
    %557 = vrot.lane.b32.xlu0 %v556, 96
    %v558 = vpop.permute.xlu0 %557
    %v559 = vsel %vm136, %v558, 0
    %561 = vmatprep.subr.mxu0 0.0
    %562 = vmatpush1.msra.mxu0 0.0
    %563 = vmatprep.subr.mxu0 0.0
    %564 = vmatpush1.msra.mxu0 0.0
    %565 = vmatprep.subr.mxu0 0.0
    %566 = vmatpush1.msra.mxu0 0.0
    %567 = vmatprep.subr.mxu0 0.0
    %568 = vmatpush1.msra.mxu0 0.0
    %569 = vmatprep.subr.mxu0 0.0
    %570 = vmatpush1.msra.mxu0 0.0
    %571 = vmatprep.subr.mxu0 0.0
    %572 = vmatpush1.msra.mxu0 0.0
    %573 = vmatprep.subr.mxu0 0.0
    %574 = vmatpush1.msra.mxu0 0.0
    %575 = vmatprep.subr.mxu0 0.0
    %576 = vmatpush1.msra.mxu0 0.0
    %577 = vmatprep.subr.mxu0 0.0
    %578 = vmatpush1.msra.mxu0 0.0
    %579 = vmatprep.subr.mxu0 0.0
    %580 = vmatpush1.msra.mxu0 0.0
    %581 = vmatprep.subr.mxu0 0.0
    %582 = vmatpush1.msra.mxu0 0.0
    %583 = vmatprep.subr.mxu0 0.0
    %584 = vmatpush1.msra.mxu0 0.0
    %585 = vmatprep.subr.mxu0 0.0
    %586 = vmatpush1.msra.mxu0 0.0
    %587 = vmatprep.subr.mxu0 0.0
    %588 = vmatpush1.msra.mxu0 0.0
    %589 = vmatprep.subr.mxu0 0.0
    %590 = vmatpush1.msra.mxu0 %v38
    %591 = vmatprep.subr.mxu0 0.0
    %592 = vmatpush1.msra.mxu0 %v37
    %593 = vmatprep.subr.mxu0 0.0
    %594 = vmatpush2.msra.mxu0 0.0
    %595 = vmatprep.subr.mxu0 0.0
    %596 = vmatpush2.msra.mxu0 0.0
    %597 = vmatprep.subr.mxu0 0.0
    %598 = vmatpush2.msra.mxu0 0.0
    %599 = vmatprep.subr.mxu0 0.0
    %600 = vmatpush2.msra.mxu0 0.0
    %601 = vmatprep.subr.mxu0 0.0
    %602 = vmatpush2.msra.mxu0 0.0
    %603 = vmatprep.subr.mxu0 0.0
    %604 = vmatpush2.msra.mxu0 0.0
    %605 = vmatprep.subr.mxu0 0.0
    %606 = vmatpush2.msra.mxu0 0.0
    %607 = vmatprep.subr.mxu0 0.0
    %608 = vmatpush2.msra.mxu0 0.0
    %609 = vmatprep.subr.mxu0 0.0
    %610 = vmatpush2.msra.mxu0 0.0
    %611 = vmatprep.subr.mxu0 0.0
    %612 = vmatpush2.msra.mxu0 0.0
    %613 = vmatprep.subr.mxu0 0.0
    %614 = vmatpush2.msra.mxu0 0.0
    %615 = vmatprep.subr.mxu0 0.0
    %616 = vmatpush2.msra.mxu0 0.0
    %617 = vmatprep.subr.mxu0 0.0
    %618 = vmatpush2.msra.mxu0 0.0
    %619 = vmatprep.subr.mxu0 0.0
    %620 = vmatpush2.msra.mxu0 0.0
    %621 = vmatprep.subr.mxu0 0.0
    %622 = vmatpush2.msra.mxu0 0.0
    %623 = vmatprep.subr.mxu0 0.0
    %624 = vmatpush2.msra.mxu0 0.0
    %625 = vmatprep.mubr.f32.mxu0 0.0
    %626 = vmatmul.mubr.f32.gmra.mxu0 %v559
    %v627 = vpop.f32.mrf.mxu0
    %v628 = vadd.f32 0.0, %v627
    %v629 = vpop.f32.mrf.mxu0
    %630 = vdwg.mxu0
    %v631 = vadd.f32 %v133, %v628
    %v632 = vxor.u32 %v631, 2147483648
    %v633 = vmul.f32 %v632, 1.442695
    %v634 = vpow.pop %v633
    %v635 = vadd.f32 %v634, 1.0
    %v636 = vrcp.pop %v635
    %v637 = vmul.f32 1.0, %v636
    %v638 = vtanh.pop %v631
    %v640 = vrot.slane %v548, 6
    %v642 = vmul.f32 %v637, %v640
    %644 = vrot.lane.b32.xlu0 %v638, 80
    %v645 = vpop.permute.xlu0 %644
    %v647 = vmul.f32 %v637, %v645
    %649 = vrot.lane.b32.xlu0 %v647, 16
    %v650 = vpop.permute.xlu0 %649
    %v652 = vadd.f32 %v642, %v650
    %v653 = vtanh.pop %v652
    %655 = vrot.lane.b32.xlu0 %v653, 16
    %v656 = vpop.permute.xlu0 %655
    %v658 = vmul.f32 %v637, %v656
    %660 = vrot.lane.b32.xlu0 %v658, 96
    %v661 = vpop.permute.xlu0 %660
    %v662 = vsel %vm136, %v661, 0
    %664 = vmatprep.subr.mxu0 0.0
    %665 = vmatpush1.msra.mxu0 0.0
    %666 = vmatprep.subr.mxu0 0.0
    %667 = vmatpush1.msra.mxu0 0.0
    %668 = vmatprep.subr.mxu0 0.0
    %669 = vmatpush1.msra.mxu0 0.0
    %670 = vmatprep.subr.mxu0 0.0
    %671 = vmatpush1.msra.mxu0 0.0
    %672 = vmatprep.subr.mxu0 0.0
    %673 = vmatpush1.msra.mxu0 0.0
    %674 = vmatprep.subr.mxu0 0.0
    %675 = vmatpush1.msra.mxu0 0.0
    %676 = vmatprep.subr.mxu0 0.0
    %677 = vmatpush1.msra.mxu0 0.0
    %678 = vmatprep.subr.mxu0 0.0
    %679 = vmatpush1.msra.mxu0 0.0
    %680 = vmatprep.subr.mxu0 0.0
    %681 = vmatpush1.msra.mxu0 0.0
    %682 = vmatprep.subr.mxu0 0.0
    %683 = vmatpush1.msra.mxu0 0.0
    %684 = vmatprep.subr.mxu0 0.0
    %685 = vmatpush1.msra.mxu0 0.0
    %686 = vmatprep.subr.mxu0 0.0
    %687 = vmatpush1.msra.mxu0 0.0
    %688 = vmatprep.subr.mxu0 0.0
    %689 = vmatpush1.msra.mxu0 0.0
    %690 = vmatprep.subr.mxu0 0.0
    %691 = vmatpush1.msra.mxu0 0.0
    %692 = vmatprep.subr.mxu0 0.0
    %693 = vmatpush1.msra.mxu0 %v38
    %694 = vmatprep.subr.mxu0 0.0
    %695 = vmatpush1.msra.mxu0 %v37
    %696 = vmatprep.subr.mxu0 0.0
    %697 = vmatpush2.msra.mxu0 0.0
    %698 = vmatprep.subr.mxu0 0.0
    %699 = vmatpush2.msra.mxu0 0.0
    %700 = vmatprep.subr.mxu0 0.0
    %701 = vmatpush2.msra.mxu0 0.0
    %702 = vmatprep.subr.mxu0 0.0
    %703 = vmatpush2.msra.mxu0 0.0
    %704 = vmatprep.subr.mxu0 0.0
    %705 = vmatpush2.msra.mxu0 0.0
    %706 = vmatprep.subr.mxu0 0.0
    %707 = vmatpush2.msra.mxu0 0.0
    %708 = vmatprep.subr.mxu0 0.0
    %709 = vmatpush2.msra.mxu0 0.0
    %710 = vmatprep.subr.mxu0 0.0
    %711 = vmatpush2.msra.mxu0 0.0
    %712 = vmatprep.subr.mxu0 0.0
    %713 = vmatpush2.msra.mxu0 0.0
    %714 = vmatprep.subr.mxu0 0.0
    %715 = vmatpush2.msra.mxu0 0.0
    %716 = vmatprep.subr.mxu0 0.0
    %717 = vmatpush2.msra.mxu0 0.0
    %718 = vmatprep.subr.mxu0 0.0
    %719 = vmatpush2.msra.mxu0 0.0
    %720 = vmatprep.subr.mxu0 0.0
    %721 = vmatpush2.msra.mxu0 0.0
    %722 = vmatprep.subr.mxu0 0.0
    %723 = vmatpush2.msra.mxu0 0.0
    %724 = vmatprep.subr.mxu0 0.0
    %725 = vmatpush2.msra.mxu0 0.0
    %726 = vmatprep.subr.mxu0 0.0
    %727 = vmatpush2.msra.mxu0 0.0
    %728 = vmatprep.mubr.f32.mxu0 0.0
    %729 = vmatmul.mubr.f32.gmra.mxu0 %v662
    %v730 = vpop.f32.mrf.mxu0
    %v731 = vadd.f32 0.0, %v730
    %v732 = vpop.f32.mrf.mxu0
    %733 = vdwg.mxu0
    %v735 = vrot.slane %v731, 6
    %v737 = vadd.f32 %v133, %v735
    %v738 = vxor.u32 %v737, 2147483648
    %v739 = vmul.f32 %v738, 1.442695
    %v740 = vpow.pop %v739
    %v741 = vadd.f32 %v740, 1.0
    %v742 = vrcp.pop %v741
    %v743 = vmul.f32 1.0, %v742
    %v744 = vtanh.pop %v737
    %v746 = vrot.slane %v652, 6
    %v748 = vmul.f32 %v743, %v746
    %750 = vrot.lane.b32.xlu0 %v744, 80
    %v751 = vpop.permute.xlu0 %750
    %v753 = vmul.f32 %v743, %v751
    %755 = vrot.lane.b32.xlu0 %v753, 16
    %v756 = vpop.permute.xlu0 %755
    %v758 = vadd.f32 %v748, %v756
    %v759 = vtanh.pop %v758
    %761 = vrot.lane.b32.xlu0 %v759, 16
    %v762 = vpop.permute.xlu0 %761
    %v764 = vmul.f32 %v743, %v762
    %v766 = vrot.slane %v764, 2
    %767 = vrot.lane.b32.xlu0 %v766, 96
    %v768 = vpop.permute.xlu0 %767
    %v769 = vsel %vm136, %v768, 0
    %771 = vmatprep.subr.mxu0 0.0
    %772 = vmatpush1.msra.mxu0 0.0
    %773 = vmatprep.subr.mxu0 0.0
    %774 = vmatpush1.msra.mxu0 0.0
    %775 = vmatprep.subr.mxu0 0.0
    %776 = vmatpush1.msra.mxu0 0.0
    %777 = vmatprep.subr.mxu0 0.0
    %778 = vmatpush1.msra.mxu0 0.0
    %779 = vmatprep.subr.mxu0 0.0
    %780 = vmatpush1.msra.mxu0 0.0
    %781 = vmatprep.subr.mxu0 0.0
    %782 = vmatpush1.msra.mxu0 0.0
    %783 = vmatprep.subr.mxu0 0.0
    %784 = vmatpush1.msra.mxu0 0.0
    %785 = vmatprep.subr.mxu0 0.0
    %786 = vmatpush1.msra.mxu0 0.0
    %787 = vmatprep.subr.mxu0 0.0
    %788 = vmatpush1.msra.mxu0 0.0
    %789 = vmatprep.subr.mxu0 0.0
    %790 = vmatpush1.msra.mxu0 0.0
    %791 = vmatprep.subr.mxu0 0.0
    %792 = vmatpush1.msra.mxu0 0.0
    %793 = vmatprep.subr.mxu0 0.0
    %794 = vmatpush1.msra.mxu0 0.0
    %795 = vmatprep.subr.mxu0 0.0
    %796 = vmatpush1.msra.mxu0 0.0
    %797 = vmatprep.subr.mxu0 0.0
    %798 = vmatpush1.msra.mxu0 0.0
    %799 = vmatprep.subr.mxu0 0.0
    %800 = vmatpush1.msra.mxu0 %v38
    %801 = vmatprep.subr.mxu0 0.0
    %802 = vmatpush1.msra.mxu0 %v37
    %803 = vmatprep.subr.mxu0 0.0
    %804 = vmatpush2.msra.mxu0 0.0
    %805 = vmatprep.subr.mxu0 0.0
    %806 = vmatpush2.msra.mxu0 0.0
    %807 = vmatprep.subr.mxu0 0.0
    %808 = vmatpush2.msra.mxu0 0.0
    %809 = vmatprep.subr.mxu0 0.0
    %810 = vmatpush2.msra.mxu0 0.0
    %811 = vmatprep.subr.mxu0 0.0
    %812 = vmatpush2.msra.mxu0 0.0
    %813 = vmatprep.subr.mxu0 0.0
    %814 = vmatpush2.msra.mxu0 0.0
    %815 = vmatprep.subr.mxu0 0.0
    %816 = vmatpush2.msra.mxu0 0.0
    %817 = vmatprep.subr.mxu0 0.0
    %818 = vmatpush2.msra.mxu0 0.0
    %819 = vmatprep.subr.mxu0 0.0
    %820 = vmatpush2.msra.mxu0 0.0
    %821 = vmatprep.subr.mxu0 0.0
    %822 = vmatpush2.msra.mxu0 0.0
    %823 = vmatprep.subr.mxu0 0.0
    %824 = vmatpush2.msra.mxu0 0.0
    %825 = vmatprep.subr.mxu0 0.0
    %826 = vmatpush2.msra.mxu0 0.0
    %827 = vmatprep.subr.mxu0 0.0
    %828 = vmatpush2.msra.mxu0 0.0
    %829 = vmatprep.subr.mxu0 0.0
    %830 = vmatpush2.msra.mxu0 0.0
    %831 = vmatprep.subr.mxu0 0.0
    %832 = vmatpush2.msra.mxu0 0.0
    %833 = vmatprep.subr.mxu0 0.0
    %834 = vmatpush2.msra.mxu0 0.0
    %835 = vmatprep.mubr.f32.mxu0 0.0
    %836 = vmatmul.mubr.f32.gmra.mxu0 %v769
    %v837 = vpop.f32.mrf.mxu0
    %v838 = vadd.f32 0.0, %v837
    %v839 = vpop.f32.mrf.mxu0
    %840 = vdwg.mxu0
    %v842 = vrot.slane %v838, 4
    %v844 = vadd.f32 %v133, %v842
    %v845 = vxor.u32 %v844, 2147483648
    %v846 = vmul.f32 %v845, 1.442695
    %v847 = vpow.pop %v846
    %v848 = vadd.f32 %v847, 1.0
    %v849 = vrcp.pop %v848
    %v850 = vmul.f32 1.0, %v849
    %v851 = vtanh.pop %v844
    %v853 = vrot.slane %v758, 6
    %v855 = vmul.f32 %v850, %v853
    %857 = vrot.lane.b32.xlu0 %v851, 80
    %v858 = vpop.permute.xlu0 %857
    %v860 = vmul.f32 %v850, %v858
    %862 = vrot.lane.b32.xlu0 %v860, 16
    %v863 = vpop.permute.xlu0 %862
    %v865 = vadd.f32 %v855, %v863
    %v866 = vtanh.pop %v865
    %868 = vrot.lane.b32.xlu0 %v866, 16
    %v869 = vpop.permute.xlu0 %868
    %v871 = vmul.f32 %v850, %v869
    %v873 = vrot.slane %v871, 4
    %874 = vrot.lane.b32.xlu0 %v873, 96
    %v875 = vpop.permute.xlu0 %874
    %v876 = vsel %vm136, %v875, 0
    %878 = vmatprep.subr.mxu0 0.0
    %879 = vmatpush1.msra.mxu0 0.0
    %880 = vmatprep.subr.mxu0 0.0
    %881 = vmatpush1.msra.mxu0 0.0
    %882 = vmatprep.subr.mxu0 0.0
    %883 = vmatpush1.msra.mxu0 0.0
    %884 = vmatprep.subr.mxu0 0.0
    %885 = vmatpush1.msra.mxu0 0.0
    %886 = vmatprep.subr.mxu0 0.0
    %887 = vmatpush1.msra.mxu0 0.0
    %888 = vmatprep.subr.mxu0 0.0
    %889 = vmatpush1.msra.mxu0 0.0
    %890 = vmatprep.subr.mxu0 0.0
    %891 = vmatpush1.msra.mxu0 0.0
    %892 = vmatprep.subr.mxu0 0.0
    %893 = vmatpush1.msra.mxu0 0.0
    %894 = vmatprep.subr.mxu0 0.0
    %895 = vmatpush1.msra.mxu0 0.0
    %896 = vmatprep.subr.mxu0 0.0
    %897 = vmatpush1.msra.mxu0 0.0
    %898 = vmatprep.subr.mxu0 0.0
    %899 = vmatpush1.msra.mxu0 0.0
    %900 = vmatprep.subr.mxu0 0.0
    %901 = vmatpush1.msra.mxu0 0.0
    %902 = vmatprep.subr.mxu0 0.0
    %903 = vmatpush1.msra.mxu0 0.0
    %904 = vmatprep.subr.mxu0 0.0
    %905 = vmatpush1.msra.mxu0 0.0
    %906 = vmatprep.subr.mxu0 0.0
    %907 = vmatpush1.msra.mxu0 %v38
    %908 = vmatprep.subr.mxu0 0.0
    %909 = vmatpush1.msra.mxu0 %v37
    %910 = vmatprep.subr.mxu0 0.0
    %911 = vmatpush2.msra.mxu0 0.0
    %912 = vmatprep.subr.mxu0 0.0
    %913 = vmatpush2.msra.mxu0 0.0
    %914 = vmatprep.subr.mxu0 0.0
    %915 = vmatpush2.msra.mxu0 0.0
    %916 = vmatprep.subr.mxu0 0.0
    %917 = vmatpush2.msra.mxu0 0.0
    %918 = vmatprep.subr.mxu0 0.0
    %919 = vmatpush2.msra.mxu0 0.0
    %920 = vmatprep.subr.mxu0 0.0
    %921 = vmatpush2.msra.mxu0 0.0
    %922 = vmatprep.subr.mxu0 0.0
    %923 = vmatpush2.msra.mxu0 0.0
    %924 = vmatprep.subr.mxu0 0.0
    %925 = vmatpush2.msra.mxu0 0.0
    %926 = vmatprep.subr.mxu0 0.0
    %927 = vmatpush2.msra.mxu0 0.0
    %928 = vmatprep.subr.mxu0 0.0
    %929 = vmatpush2.msra.mxu0 0.0
    %930 = vmatprep.subr.mxu0 0.0
    %931 = vmatpush2.msra.mxu0 0.0
    %932 = vmatprep.subr.mxu0 0.0
    %933 = vmatpush2.msra.mxu0 0.0
    %934 = vmatprep.subr.mxu0 0.0
    %935 = vmatpush2.msra.mxu0 0.0
    %936 = vmatprep.subr.mxu0 0.0
    %937 = vmatpush2.msra.mxu0 0.0
    %938 = vmatprep.subr.mxu0 0.0
    %939 = vmatpush2.msra.mxu0 0.0
    %940 = vmatprep.subr.mxu0 0.0
    %941 = vmatpush2.msra.mxu0 0.0
    %942 = vmatprep.mubr.f32.mxu0 0.0
    %943 = vmatmul.mubr.f32.gmra.mxu0 %v876
    %v944 = vpop.f32.mrf.mxu0
    %v945 = vadd.f32 0.0, %v944
    %v946 = vpop.f32.mrf.mxu0
    %947 = vdwg.mxu0
    %v949 = vrot.slane %v945, 2
    %v951 = vadd.f32 %v133, %v949
    %v952 = vxor.u32 %v951, 2147483648
    %v953 = vmul.f32 %v952, 1.442695
    %v954 = vpow.pop %v953
    %v955 = vadd.f32 %v954, 1.0
    %v956 = vrcp.pop %v955
    %v957 = vmul.f32 1.0, %v956
    %v958 = vtanh.pop %v951
    %v960 = vrot.slane %v865, 6
    %v962 = vmul.f32 %v957, %v960
    %964 = vrot.lane.b32.xlu0 %v958, 80
    %v965 = vpop.permute.xlu0 %964
    %v967 = vmul.f32 %v957, %v965
    %969 = vrot.lane.b32.xlu0 %v967, 16
    %v970 = vpop.permute.xlu0 %969
    %v972 = vadd.f32 %v962, %v970
    %v973 = vtanh.pop %v972
    %975 = vrot.lane.b32.xlu0 %v973, 16
    %v976 = vpop.permute.xlu0 %975
    %v978 = vmul.f32 %v957, %v976
    %vm979 = vcmask 1041408
    %v980 = vsel %vm979, %v234, %v340
    %vm981 = vcmask 1043456
    %v982 = vsel %vm981, %v980, %v447
    %vm983 = vcmask 1045504
    %v984 = vsel %vm983, %v982, %v554
    %v985 = vsel %vm979, %v658, %v764
    %v986 = vsel %vm981, %v985, %v871
    %v987 = vsel %vm983, %v986, %v978
    %990 = vrot.lane.b32.xlu0 %v984, 96
    %v991 = vpop.permute.xlu0 %990
    %992 = vrot.lane.b32.xlu0 %v987, 96
    %v993 = vpop.permute.xlu0 %992
    %v996 = vsel %vm136, %v991, 0.0
    %997 = vadd.xlane.f32.xlu0 %v996
    %v998 = vpop.xlane.xlu0 %997
    %v999 = vsel %vm136, %v993, 0.0
    %1000 = vadd.xlane.f32.xlu0 %v999
    %v1001 = vpop.xlane.xlu0 %1000
    %v1002 = vrcp.pop 16.0
    %v1003 = vmul.f32 %v998, %v1002
    %v1004 = vmul.f32 %v1001, %v1002
    %v1005 = vmul.f32 %v984, %v984
    %v1006 = vmul.f32 %v987, %v987
    %1009 = vrot.lane.b32.xlu0 %v1005, 96
    %v1010 = vpop.permute.xlu0 %1009
    %1011 = vrot.lane.b32.xlu0 %v1006, 96
    %v1012 = vpop.permute.xlu0 %1011
    %v1015 = vsel %vm136, %v1010, 0.0
    %1016 = vadd.xlane.f32.xlu0 %v1015
    %v1017 = vpop.xlane.xlu0 %1016
    %v1018 = vsel %vm136, %v1012, 0.0
    %1019 = vadd.xlane.f32.xlu0 %v1018
    %v1020 = vpop.xlane.xlu0 %1019
    %v1021 = vmul.f32 %v1017, %v1002
    %v1022 = vmul.f32 %v1020, %v1002
    %v1023 = vmul.f32 %v1003, %v1003
    %v1024 = vmul.f32 %v1004, %v1004
    %v1025 = vsub.f32 %v1021, %v1023
    %v1026 = vsub.f32 %v1022, %v1024
    %v1027 = vsub.f32 %v984, %v1003
    %v1028 = vsub.f32 %v987, %v1004
    %v1029 = vadd.f32 %v1025, 1e-05
    %v1030 = vadd.f32 %v1026, 1e-05
    %v1031 = vrsqrt.pop %v1029
    %v1032 = vrsqrt.pop %v1030
    %v1033 = vmul.f32 %v1027, %v1031
    %v1034 = vmul.f32 %v1028, %v1032
    %v1036 = vlaneseq
    %v1037 = vshrl.u32 %v1036, 7
    %v1038 = vsub.s32 0, %v1037
    %v1039 = vrot.slane %v39, %v1038
    %1040 = vrot.lane.b32.xlu0 %v1039, 32
    %v1041 = vpop.permute.xlu0 %1040
    %v1043 = vmul.f32 %v1033, %v1041
    %v1044 = vmul.f32 %v1034, %v1041
    %v1046 = vlaneseq
    %v1047 = vshrl.u32 %v1046, 7
    %v1048 = vsub.s32 0, %v1047
    %v1049 = vrot.slane %v40, %v1048
    %1050 = vrot.lane.b32.xlu0 %v1049, 32
    %v1051 = vpop.permute.xlu0 %1050
    %v1053 = vadd.f32 %v1043, %v1051
    %v1054 = vadd.f32 %v1044, %v1051
    %v1055 = vmax.f32 %v1053, 0.0
    %v1056 = vmax.f32 %v1054, 0.0
    %1058 = vrot.lane.b32.xlu0 %v1055, 96
    %v1059 = vpop.permute.xlu0 %1058
    %vm1061 = vcmask 123904
    %1062 = vst.msk [vmem:[%s6] sm:$0x3] %vm1061, %v1059
    %1063 = vrot.lane.b32.xlu0 %v1055, 112
    %v1064 = vpop.permute.xlu0 %1063
    %vm1066 = vcmask 257154
    %1067 = vst.msk [vmem:[%s6 - $0x2] sm:$0xc] %vm1066, %v1064
    %vm1068 = vcmask 390404
    %1069 = vst.msk [vmem:[%s6 - $0x4] sm:$0x30] %vm1068, %v1055
    %1070 = vrot.lane.b32.xlu0 %v1055, 16
    %v1071 = vpop.permute.xlu0 %1070
    %vm1073 = vcmask 523654
    %1074 = vst.msk [vmem:[%s6 - $0x6] sm:$0xc0] %vm1073, %v1071
    %1076 = vrot.lane.b32.xlu0 %v1056, 32
    %v1077 = vpop.permute.xlu0 %1076
    %vm1079 = vcmask 648704
    %1080 = vst.msk [vmem:[%s6] sm:$0x3] %vm1079, %v1077
    %1081 = vrot.lane.b32.xlu0 %v1056, 48
    %v1082 = vpop.permute.xlu0 %1081
    %vm1084 = vcmask 781954
    %1085 = vst.msk [vmem:[%s6 - $0x2] sm:$0xc] %vm1084, %v1082
    %1086 = vrot.lane.b32.xlu0 %v1056, 64
    %v1087 = vpop.permute.xlu0 %1086
    %vm1089 = vcmask 915204
    %1090 = vst.msk [vmem:[%s6 - $0x4] sm:$0x30] %vm1089, %v1087
    %1091 = vrot.lane.b32.xlu0 %v1056, 80
    %v1092 = vpop.permute.xlu0 %1091
    %vm1094 = vcmask 1048454
    %1095 = vst.msk [vmem:[%s6 - $0x6] sm:$0xc0] %vm1094, %v1092
    // Predicated region
    $region30: #{lstm_module_forward.1} parent=1 // pred_check
      _
    $region31: #{lstm_module_forward.1} parent=1 // pred_check_branch
      %1097 = sbr.rel (0) target = $region33
    $region32: #{lstm_module_forward.1} parent=1 // pred_region
      _
    $region33: #{lstm_module_forward.1} parent=1 // pred_fallthru
      _
    // Predicated region
    $region34: #{lstm_module_forward.1} parent=1 // pred_check
      _
    $region35: #{lstm_module_forward.1} parent=1 // pred_check_branch
      %1099 = sbr.rel (0) target = $region37
    $region36: #{lstm_module_forward.1} parent=1 // pred_region
      _
    $region37: #{lstm_module_forward.1} parent=1 // pred_fallthru
      _
    %1100 = vsyncpa [#allocation3], 1

</llo_original>
